<compile_context>
chip_gen: v5e
topology: v5e:2x2
jax: 0.10.0
libtpu: 0.0.40
codegen_flags: <defaults>
</compile_context>

<pallas_src>
import functools

import jax
import jax.numpy as jnp
from jax.experimental import pallas as pl
from jax.experimental.pallas import tpu as pltpu


def _residual_block_kernel(halo_ref, x_ref, cond_ref, w1_ref, b1_ref,
                           w2_ref, b2_ref, out_ref, skip_ref,
                           *, dilation, kernel_size):
    """One grid step == one (batch element, time tile).

    halo_ref : (Cr, pad)       causal history for this tile (x.dtype)
    x_ref    : (Cr, Tt)        current tile of x (x.dtype, exact residual)
    cond_ref : (Cc, Tt)        conditioning tile (compute dtype)
    w1_ref   : (G, K*Cr + Cc)  fused [dilated taps | condition] weight
    b1_ref   : (G, 1)          fused bias (bd + bc), f32
    w2_ref   : (Cr + Cs, G//2) fused [output conv ; skip conv] weight
    b2_ref   : (Cr + Cs, 1)    fused bias [bo ; bs], f32
    out_ref  : (Cr, Tt)        residual output (+ x)
    skip_ref : (Cs, Tt)        skip output
    """
    K = kernel_size
    Cr, Tt = x_ref.shape

    x_in = x_ref[...]                                   # (Cr, Tt) original dtype

    # Causal window [history halo | current tile] -> (Cr, pad + Tt), f32 build.
    xw = jnp.concatenate([halo_ref[...], x_in], axis=-1)

    # K dilated taps; the last tap (j = K-1) is exactly the current tile.
    taps = [xw[:, j * dilation: j * dilation + Tt] for j in range(K - 1)]
    taps.append(x_in)

    # Stacked activation (K*Cr + Cc, Tt): build in f32 (sublane-aligned concat),
    # then a single cast to the MXU compute dtype.
    a = jnp.concatenate(taps + [cond_ref[...].astype(x_in.dtype)], axis=0)
    a = a.astype(w1_ref.dtype)

    # Fused dilated conv + 1x1 condition conv: one MXU push, f32 accumulation.
    acc = jnp.dot(w1_ref[...], a, preferred_element_type=jnp.float32)
    acc = acc + b1_ref[...]                              # (G, Tt) f32

    # Gated activation (f32 math; chunk order matches torch.chunk(dim=1)).
    half = acc.shape[0] // 2
    gated = jnp.tanh(acc[:half]) * jax.nn.sigmoid(acc[half:])   # (G//2, Tt) f32

    # Fused 1x1 output conv + 1x1 skip conv: one MXU push.
    outskip = jnp.dot(w2_ref[...], gated.astype(w2_ref.dtype),
                      preferred_element_type=jnp.float32) + b2_ref[...]

    # Residual add from the original-dtype x tile (exact even with bf16 MXU).
    out_ref[...] = (outskip[:Cr] + x_in.astype(jnp.float32)).astype(out_ref.dtype)
    skip_ref[...] = outskip[Cr:].astype(skip_ref.dtype)


def residual_block(x, condition, params, *, dilation, t_tile=None,
                   compute_dtype=jnp.bfloat16):
    """x: (B, Cr, T), condition: (B, Cc, T) -> (output (B,Cr,T), skip (B,Cs,T)).

    compute_dtype: dtype of the MXU operands (weights + stacked activation).
    Default bf16 (v5e/v6e/v7x MXU fast path); accumulation, gating and the
    residual add stay f32.  Pass jnp.float32 (or None) for an all-f32 path.
    """
    B, Cr, T = x.shape
    Cc = condition.shape[1]
    wd, bd = params["wd"], params["bd"]          # (G, Cr, K), (G, 1)
    wc, bc = params["wc"], params["bc"]          # (G, Cc),    (G, 1)
    wo, bo = params["wo"], params["bo"]          # (Cr, G//2), (Cr, 1)
    ws, bs = params["ws"], params["bs"]          # (Cs, G//2), (Cs, 1)
    G, _, K = wd.shape
    Cs = ws.shape[0]
    pad = (K - 1) * dilation
    assert pad > 0, "kernel_size must be >= 2"

    if compute_dtype is None:
        compute_dtype = x.dtype

    if t_tile is None:
        for cand in (512, 256, 128):
            if T % cand == 0:
                t_tile = cand
                break
        else:
            t_tile = T
    assert T % t_tile == 0, "t_tile must divide T"
    assert t_tile % 128 == 0 or t_tile == T, "t_tile must be a multiple of 128"
    nt = T // t_tile

    # Causal halo per tile: pad samples of history, zero only at global t=0.
    xp = jnp.pad(x, ((0, 0), (0, 0), (pad, 0)))                 # (B, Cr, T+pad)
    halo = jnp.stack(
        [xp[:, :, it * t_tile: it * t_tile + pad] for it in range(nt)],
        axis=0)                                                 # (nt, B, Cr, pad)

    cond = condition.astype(compute_dtype)

    # Fused weights / biases (pre-stacked once in the wrapper).
    w1 = jnp.concatenate([wd[:, :, j] for j in range(K)] + [wc],
                         axis=1).astype(compute_dtype)          # (G, K*Cr+Cc)
    b1 = (bd + bc).astype(jnp.float32)                          # (G, 1)
    w2 = jnp.concatenate([wo, ws], axis=0).astype(compute_dtype)  # (Cr+Cs, G//2)
    b2 = jnp.concatenate([bo, bs], axis=0).astype(jnp.float32)    # (Cr+Cs, 1)

    kernel = functools.partial(_residual_block_kernel,
                               dilation=dilation, kernel_size=K)

    out, skip = pl.pallas_call(
        kernel,
        out_shape=(jax.ShapeDtypeStruct((B, Cr, T), x.dtype),
                   jax.ShapeDtypeStruct((B, Cs, T), x.dtype)),
        grid=(B, nt),
        in_specs=[
            pl.BlockSpec((None, None, Cr, pad), lambda ib, it: (it, ib, 0, 0)),
            pl.BlockSpec((None, Cr, t_tile), lambda ib, it: (ib, 0, it)),
            pl.BlockSpec((None, Cc, t_tile), lambda ib, it: (ib, 0, it)),
            pl.BlockSpec(w1.shape, lambda ib, it: (0, 0)),
            pl.BlockSpec(b1.shape, lambda ib, it: (0, 0)),
            pl.BlockSpec(w2.shape, lambda ib, it: (0, 0)),
            pl.BlockSpec(b2.shape, lambda ib, it: (0, 0)),
        ],
        out_specs=(
            pl.BlockSpec((None, Cr, t_tile), lambda ib, it: (ib, 0, it)),
            pl.BlockSpec((None, Cs, t_tile), lambda ib, it: (ib, 0, it)),
        ),
        compiler_params=pltpu.CompilerParams(
            dimension_semantics=("parallel", "parallel")),
    )(halo, x, cond, w1, b1, w2, b2)
    return out, skip


def ref_forward(x, condition, params, *, dilation):
    """Pure-JAX reference matching the PyTorch module semantics."""
    wd, bd = params["wd"], params["bd"]
    wc, bc = params["wc"], params["bc"]
    wo, bo = params["wo"], params["bo"]
    ws, bs = params["ws"], params["bs"]
    G, Cr, K = wd.shape
    B, _, T = x.shape
    pad = (K - 1) * dilation
    xp = jnp.pad(x, ((0, 0), (0, 0), (pad, 0)))
    acc = jnp.broadcast_to(bd.reshape(1, G, 1), (B, G, T))
    for j in range(K):
        acc = acc + jnp.einsum('gc,bct->bgt', wd[:, :, j],
                               xp[:, :, j * dilation: j * dilation + T])
    acc = acc + jnp.einsum('gc,bct->bgt', wc, condition) + bc.reshape(1, G, 1)
    half = G // 2
    gated = jnp.tanh(acc[:, :half]) * jax.nn.sigmoid(acc[:, half:])
    skip = jnp.einsum('sc,bct->bst', ws, gated) + bs.reshape(1, -1, 1)
    out = jnp.einsum('rc,bct->brt', wo, gated) + bo.reshape(1, -1, 1) + x
    return out, skip


if __name__ == "__main__":
    # Module hyper-parameters (small, consistent with the PyTorch __init__).
    B, T = 2, 512
    residual_channels = 8
    gate_channels = 16
    skip_channels = 8
    kernel_size = 3
    dilation = 2
    condition_channels = 4

    key = jax.random.PRNGKey(0)
    keys = jax.random.split(key, 10)
    params = {
        # dilated causal conv (PyTorch Conv1d weight layout: (out, in, k))
        "wd": jax.random.normal(keys[0], (gate_channels, residual_channels,
                                          kernel_size), jnp.float32) * 0.1,
        "bd": jax.random.normal(keys[1], (gate_channels, 1), jnp.float32) * 0.1,
        # 1x1 condition conv
        "wc": jax.random.normal(keys[2], (gate_channels, condition_channels),
                                jnp.float32) * 0.1,
        "bc": jax.random.normal(keys[3], (gate_channels, 1), jnp.float32) * 0.1,
        # 1x1 output conv
        "wo": jax.random.normal(keys[4], (residual_channels, gate_channels // 2),
                                jnp.float32) * 0.1,
        "bo": jax.random.normal(keys[5], (residual_channels, 1), jnp.float32) * 0.1,
        # 1x1 skip conv
        "ws": jax.random.normal(keys[6], (skip_channels, gate_channels // 2),
                                jnp.float32) * 0.1,
        "bs": jax.random.normal(keys[7], (skip_channels, 1), jnp.float32) * 0.1,
    }
    x = jax.random.normal(keys[8], (B, residual_channels, T), jnp.float32)
    cond = jax.random.normal(keys[9], (B, condition_channels, T), jnp.float32)

    ref_out, ref_skip = ref_forward(x, cond, params, dilation=dilation)

    # All-f32 path: bit-tight against the reference.
    out32, skip32 = residual_block(x, cond, params, dilation=dilation,
                                   compute_dtype=jnp.float32)
    jax.block_until_ready((out32, skip32))
    assert jnp.allclose(out32, ref_out, atol=1e-3, rtol=1e-3)
    assert jnp.allclose(skip32, ref_skip, atol=1e-3, rtol=1e-3)

    # Default path: bf16 MXU operands, f32 accumulation/gating, exact f32 residual.
    out, skip = residual_block(x, cond, params, dilation=dilation)
    jax.block_until_ready((out, skip))
    assert jnp.allclose(out, ref_out, atol=5e-2, rtol=5e-2)
    assert jnp.allclose(skip, ref_skip, atol=5e-2, rtol=5e-2)

    print("KERNEL_OK")
</pallas_src>

<mosaic_0001>
module attributes {stable_mosaic.version = 11 : i64} {
  func.func @_residual_block_kernel(%arg0: i32, %arg1: i32, %arg2: memref<1x1x8x4xf32, #tpu.memory_space<vmem>>, %arg3: memref<1x8x512xf32, #tpu.memory_space<vmem>>, %arg4: memref<1x4x512xf32, #tpu.memory_space<vmem>>, %arg5: memref<16x28xf32, #tpu.memory_space<vmem>>, %arg6: memref<16x1xf32, #tpu.memory_space<vmem>>, %arg7: memref<16x8xf32, #tpu.memory_space<vmem>>, %arg8: memref<16x1xf32, #tpu.memory_space<vmem>>, %arg9: memref<1x8x512xf32, #tpu.memory_space<vmem>>, %arg10: memref<1x8x512xf32, #tpu.memory_space<vmem>>) attributes {dimension_semantics = [#tpu.dimension_semantics<parallel>, #tpu.dimension_semantics<parallel>], iteration_bounds = array<i64: 2, 1>, scalar_prefetch = 0 : i64, scratch_operands = 0 : i64, tpu.core_type = #tpu.core_type<tc>, window_params = [{transform_indices = @transform_0, window_bounds = array<i64: 1, 1, 8, 4>}, {transform_indices = @transform_1, window_bounds = array<i64: 1, 8, 512>}, {transform_indices = @transform_2, window_bounds = array<i64: 1, 4, 512>}, {pipeline_mode = #tpu.pipeline_mode<synchronous>, transform_indices = @transform_3, window_bounds = array<i64: 16, 28>}, {pipeline_mode = #tpu.pipeline_mode<synchronous>, transform_indices = @transform_4, window_bounds = array<i64: 16, 1>}, {pipeline_mode = #tpu.pipeline_mode<synchronous>, transform_indices = @transform_5, window_bounds = array<i64: 16, 8>}, {pipeline_mode = #tpu.pipeline_mode<synchronous>, transform_indices = @transform_6, window_bounds = array<i64: 16, 1>}, {transform_indices = @transform_7, window_bounds = array<i64: 1, 8, 512>}, {transform_indices = @transform_8, window_bounds = array<i64: 1, 8, 512>}]} {
    %c0 = arith.constant 0 : index
    %c0_0 = arith.constant 0 : index
    %c0_1 = arith.constant 0 : index
    %0 = vector.load %arg3[%c0, %c0_0, %c0_1] : memref<1x8x512xf32, #tpu.memory_space<vmem>>, vector<1x8x512xf32>
    %1 = vector.shape_cast %0 : vector<1x8x512xf32> to vector<8x512xf32>
    %c0_2 = arith.constant 0 : index
    %c0_3 = arith.constant 0 : index
    %c0_4 = arith.constant 0 : index
    %c0_5 = arith.constant 0 : index
    %2 = vector.load %arg2[%c0_2, %c0_3, %c0_4, %c0_5] : memref<1x1x8x4xf32, #tpu.memory_space<vmem>>, vector<1x1x8x4xf32>
    %3 = vector.shape_cast %2 : vector<1x1x8x4xf32> to vector<8x4xf32>
    %4 = tpu.concatenate %3, %1 in 1 : vector<8x4xf32>, vector<8x512xf32> -> vector<8x516xf32>
    %5 = vector.extract_strided_slice %4 {offsets = [0, 0], sizes = [8, 512], strides = [1, 1]} : vector<8x516xf32> to vector<8x512xf32>
    %6 = vector.extract_strided_slice %4 {offsets = [0, 2], sizes = [8, 512], strides = [1, 1]} : vector<8x516xf32> to vector<8x512xf32>
    %c0_6 = arith.constant 0 : index
    %c0_7 = arith.constant 0 : index
    %c0_8 = arith.constant 0 : index
    %7 = vector.load %arg4[%c0_6, %c0_7, %c0_8] : memref<1x4x512xf32, #tpu.memory_space<vmem>>, vector<1x4x512xf32>
    %8 = vector.shape_cast %7 : vector<1x4x512xf32> to vector<4x512xf32>
    %9 = tpu.concatenate %5, %6, %1, %8 in 0 : vector<8x512xf32>, vector<8x512xf32>, vector<8x512xf32>, vector<4x512xf32> -> vector<28x512xf32>
    %c0_9 = arith.constant 0 : index
    %c0_10 = arith.constant 0 : index
    %10 = vector.load %arg5[%c0_9, %c0_10] : memref<16x28xf32, #tpu.memory_space<vmem>>, vector<16x28xf32>
    %cst = arith.constant dense<0.000000e+00> : vector<16x512xf32>
    %11 = tpu.matmul %10, %9, %cst {dimension_numbers = #tpu.dot_dimension_numbers<[1], [0], [0], [1], [0, 0, 1, 1], [], []>} : vector<16x28xf32>, vector<28x512xf32>, vector<16x512xf32> -> vector<16x512xf32>
    %c0_11 = arith.constant 0 : index
    %c0_12 = arith.constant 0 : index
    %12 = vector.load %arg6[%c0_11, %c0_12] : memref<16x1xf32, #tpu.memory_space<vmem>>, vector<16x1xf32>
    %13 = vector.broadcast %12 : vector<16x1xf32> to vector<16x512xf32>
    %14 = arith.addf %11, %13 : vector<16x512xf32>
    %15 = vector.extract_strided_slice %14 {offsets = [0, 0], sizes = [8, 512], strides = [1, 1]} : vector<16x512xf32> to vector<8x512xf32>
    %16 = math.tanh %15 : vector<8x512xf32>
    %17 = vector.extract_strided_slice %14 {offsets = [8, 0], sizes = [8, 512], strides = [1, 1]} : vector<16x512xf32> to vector<8x512xf32>
    %18 = arith.negf %17 : vector<8x512xf32>
    %19 = math.exp %18 : vector<8x512xf32>
    %cst_13 = arith.constant 1.000000e+00 : f32
    %20 = vector.broadcast %cst_13 : f32 to vector<8x512xf32>
    %21 = arith.addf %20, %19 : vector<8x512xf32>
    %22 = arith.divf %20, %21 : vector<8x512xf32>
    %23 = arith.mulf %16, %22 : vector<8x512xf32>
    %c0_14 = arith.constant 0 : index
    %c0_15 = arith.constant 0 : index
    %24 = vector.load %arg7[%c0_14, %c0_15] : memref<16x8xf32, #tpu.memory_space<vmem>>, vector<16x8xf32>
    %cst_16 = arith.constant dense<0.000000e+00> : vector<16x512xf32>
    %25 = tpu.matmul %24, %23, %cst_16 {dimension_numbers = #tpu.dot_dimension_numbers<[1], [0], [0], [1], [0, 0, 1, 1], [], []>} : vector<16x8xf32>, vector<8x512xf32>, vector<16x512xf32> -> vector<16x512xf32>
    %c0_17 = arith.constant 0 : index
    %c0_18 = arith.constant 0 : index
    %26 = vector.load %arg8[%c0_17, %c0_18] : memref<16x1xf32, #tpu.memory_space<vmem>>, vector<16x1xf32>
    %27 = vector.broadcast %26 : vector<16x1xf32> to vector<16x512xf32>
    %28 = arith.addf %25, %27 : vector<16x512xf32>
    %29 = vector.extract_strided_slice %28 {offsets = [0, 0], sizes = [8, 512], strides = [1, 1]} : vector<16x512xf32> to vector<8x512xf32>
    %30 = arith.addf %29, %1 : vector<8x512xf32>
    %c0_19 = arith.constant 0 : index
    %c0_20 = arith.constant 0 : index
    %c0_21 = arith.constant 0 : index
    %31 = vector.load %arg9[%c0_19, %c0_20, %c0_21] : memref<1x8x512xf32, #tpu.memory_space<vmem>>, vector<1x8x512xf32>
    %32 = vector.shape_cast %31 : vector<1x8x512xf32> to vector<8x512xf32>
    %33 = vector.shape_cast %30 : vector<8x512xf32> to vector<1x8x512xf32>
    tpu.vector_store %arg9[%c0_19, %c0_20, %c0_21], %33 {strides = array<i32>} : memref<1x8x512xf32, #tpu.memory_space<vmem>>, vector<1x8x512xf32>,
    %34 = vector.extract_strided_slice %28 {offsets = [8, 0], sizes = [8, 512], strides = [1, 1]} : vector<16x512xf32> to vector<8x512xf32>
    %c0_22 = arith.constant 0 : index
    %c0_23 = arith.constant 0 : index
    %c0_24 = arith.constant 0 : index
    %35 = vector.load %arg10[%c0_22, %c0_23, %c0_24] : memref<1x8x512xf32, #tpu.memory_space<vmem>>, vector<1x8x512xf32>
    %36 = vector.shape_cast %35 : vector<1x8x512xf32> to vector<8x512xf32>
    %37 = vector.shape_cast %34 : vector<8x512xf32> to vector<1x8x512xf32>
    tpu.vector_store %arg10[%c0_22, %c0_23, %c0_24], %37 {strides = array<i32>} : memref<1x8x512xf32, #tpu.memory_space<vmem>>, vector<1x8x512xf32>,
    return
  }
  func.func @transform_0(%arg0: i32, %arg1: i32) -> (i32, i32, i32, i32) {
    %c0_i32 = arith.constant 0 : i32
    %c0_i32_0 = arith.constant 0 : i32
    %c0_i32_1 = arith.constant 0 : i32
    return %arg1, %arg0, %c0_i32, %c0_i32_0 : i32, i32, i32, i32
  }
  func.func @transform_1(%arg0: i32, %arg1: i32) -> (i32, i32, i32) {
    %c0_i32 = arith.constant 0 : i32
    %c0_i32_0 = arith.constant 0 : i32
    return %arg0, %c0_i32, %arg1 : i32, i32, i32
  }
  func.func @transform_2(%arg0: i32, %arg1: i32) -> (i32, i32, i32) {
    %c0_i32 = arith.constant 0 : i32
    %c0_i32_0 = arith.constant 0 : i32
    return %arg0, %c0_i32, %arg1 : i32, i32, i32
  }
  func.func @transform_3(%arg0: i32, %arg1: i32) -> (i32, i32) {
    %c0_i32 = arith.constant 0 : i32
    %c0_i32_0 = arith.constant 0 : i32
    %c0_i32_1 = arith.constant 0 : i32
    return %c0_i32, %c0_i32_0 : i32, i32
  }
  func.func @transform_4(%arg0: i32, %arg1: i32) -> (i32, i32) {
    %c0_i32 = arith.constant 0 : i32
    %c0_i32_0 = arith.constant 0 : i32
    %c0_i32_1 = arith.constant 0 : i32
    return %c0_i32, %c0_i32_0 : i32, i32
  }
  func.func @transform_5(%arg0: i32, %arg1: i32) -> (i32, i32) {
    %c0_i32 = arith.constant 0 : i32
    %c0_i32_0 = arith.constant 0 : i32
    %c0_i32_1 = arith.constant 0 : i32
    return %c0_i32, %c0_i32_0 : i32, i32
  }
  func.func @transform_6(%arg0: i32, %arg1: i32) -> (i32, i32) {
    %c0_i32 = arith.constant 0 : i32
    %c0_i32_0 = arith.constant 0 : i32
    %c0_i32_1 = arith.constant 0 : i32
    return %c0_i32, %c0_i32_0 : i32, i32
  }
  func.func @transform_7(%arg0: i32, %arg1: i32) -> (i32, i32, i32) {
    %c0_i32 = arith.constant 0 : i32
    %c0_i32_0 = arith.constant 0 : i32
    return %arg0, %c0_i32, %arg1 : i32, i32, i32
  }
  func.func @transform_8(%arg0: i32, %arg1: i32) -> (i32, i32, i32) {
    %c0_i32 = arith.constant 0 : i32
    %c0_i32_0 = arith.constant 0 : i32
    return %arg0, %c0_i32, %arg1 : i32, i32, i32
  }
}

</mosaic_0001>

<llo_original>
// kernel: tpu_custom_call.1
$region0: #{tpu_custom_call.1}
  #allocation0 [shape = 'u32[]', space=smem, size = 0x4, offset = 0x4, fixed_abs, tag = 'smem constant byte address 0x4 - core index']
  #allocation1 [shape = 'u32[72,128]{1,0:T(1,128)}', space=vmem, size = 0x9000, scoped, tag = 'internal scratch']
  %s0 = inlined_call_operand.vmem [shape: f32[1,2,8,4], index: 0, kind: input, shape index: {}]
  %s1 = inlined_call_operand.hbm [shape: f32[2,8,512], index: 1, kind: input, shape index: {}]
  %s2 = inlined_call_operand.vmem [shape: f32[2,4,512], index: 2, kind: input, shape index: {}]
  %s3 = inlined_call_operand.vmem [shape: f32[16,28], index: 3, kind: input, shape index: {}]
  %s4 = inlined_call_operand.vmem [shape: f32[16,1], index: 4, kind: input, shape index: {}]
  %s5 = inlined_call_operand.vmem [shape: f32[16,8], index: 5, kind: input, shape index: {}]
  %s6 = inlined_call_operand.vmem [shape: f32[16,1], index: 6, kind: input, shape index: {}]
  %s7 = inlined_call_operand.hbm [shape: f32[2,8,512], index: 7, kind: output, shape index: {0}]
  %s8 = inlined_call_operand.hbm [shape: f32[2,8,512], index: 8, kind: output, shape index: {1}]
  %9 = xla_tuple %s7, %s8
  %s10 = sld [smem:[#allocation0]]
  $region73: #{tpu_custom_call.1} parent=0
    _
  %s12 = ssub.s32 1, %s10
  %s13 = scalar_select 0, %s12, %s10
  $region1: #{tpu_custom_call.1} parent=0
    #allocation2 [shape = 'u8[32768]{0}', space=vmem, size = 0x8000, scoped, tag = 'input window, operand 1']
    #allocation3 [shape = 's32[2]{0}', space=sflag, size = 0x8, scoped, tag = 'scoped memory for tpu_custom_call.1']
    #allocation4 [shape = 's32[2]{0}', space=sflag, size = 0x8, scoped, tag = 'scoped memory for tpu_custom_call.1']
    #allocation5 [shape = 'u8[32768]{0}', space=vmem, size = 0x8000, scoped, tag = 'output window, operand 0']
    #allocation6 [shape = 'u8[32768]{0}', space=vmem, size = 0x8000, scoped, tag = 'output window, operand 1']
    #allocation7 [shape = 's32[2]{0}', space=sflag, size = 0x8, scoped, tag = 'scoped memory for tpu_custom_call.1']
    %14 = vsyncpa [#allocation3], 0
    %s15 = scalar_lea.sflag [#allocation3], 1
    %16 = vsyncpa %s15, 0
    %17 = vsyncpa [#allocation4], 0
    %s18 = scalar_lea.sflag [#allocation4], 1
    %19 = vsyncpa %s18, 0
    %20 = vsyncpa [#allocation7], 0
    %s21 = scalar_lea.sflag [#allocation7], 1
    %22 = vsyncpa %s21, 0
    loop: start=0, step=1, limit=4
    $region2: #{tpu_custom_call.1} parent=1 // loop_pre_header
      _
    $region3: #{tpu_custom_call.1} parent=1 // loop_header
      %s24 = sphi 0, %s28
      %p25 = scmp.ge.s32.totalorder %s24, 4
      %s31 = sphi 0, %s43
      %s32 = sphi 0, %s39
      %s33 = sphi 0, %s31
      %s34 = sphi 0, %s32
      %s35 = sphi 0, %s33
      %s36 = sphi 0, %s34
      %s48 = sphi 0, %s50
      %s51 = sphi 0, %s48
      %s52 = sphi 0, %s51
      %s68 = sphi 0, %s52
      %s76 = sphi 0, %s78
      %s79 = sphi 0, %s76
      %s80 = sphi 0, %s79
      %s96 = sphi 0, %s80
      %s104 = sphi 0, %s106
      %s107 = sphi 0, %s104
      %s108 = sphi 0, %s107
      %s124 = sphi 0, %s108
      %s128 = sphi 0, %s128
      %s130 = sphi 0, %s128
      %s131 = sphi 0, %s130
      %s145 = sphi 0, %s131
      %s149 = sphi 0, %s149
      %s151 = sphi 0, %s149
      %s152 = sphi 0, %s151
      %s166 = sphi 0, %s152
      %s170 = sphi 0, %s170
      %s172 = sphi 0, %s170
      %s173 = sphi 0, %s172
      %s187 = sphi 0, %s173
      %s191 = sphi 0, %s191
      %s193 = sphi 0, %s191
      %s194 = sphi 0, %s193
      %s208 = sphi 0, %s194
      %s216 = sphi 0, %s218
      %s219 = sphi 0, %s216
      %s220 = sphi 0, %s219
      %s236 = sphi 0, %s220
      %s244 = sphi 0, %s246
      %s247 = sphi 0, %s244
      %s248 = sphi 0, %s247
      %s264 = sphi 0, %s248
    $region4: #{tpu_custom_call.1} parent=1 // loop_header_branch
      %27 = sbr.rel (%p25) target = $region8
    $region5: #{tpu_custom_call.1} parent=1 // loop_body
      %s29 = ssub.s32 %s24, 1
      %s30 = ssub.s32 %s24, 2
      %s37 = sadd.s32 1, %s32
      %p38 = scmp.ge.s32.totalorder %s37, 1
      %s39 = scalar_select %p38, 0, %s37
      %s40 = sadd.s32 1, %s31
      %s41 = scalar_select %p38, %s40, %s31
      %p42 = scmp.ge.s32.totalorder %s41, 2
      %s43 = scalar_select %p42, 0, %s41
      %s44 = ssub.s32 %s32, %s39
      %s45 = ssub.s32 %s31, %s43
      %s46 = sor.u32 %s44, %s45
      %p47 = scmp.eq.s32.totalorder %s46, 0
      %s49 = sadd.s32 %s48, 1
      %s50 = scalar_select %p47, %s48, %s49
      %p53 = pneg %p47
      %p54 = scmp.eq.s32.totalorder %s24, 1
      %p55 = por %p53, %p54
      %p56 = scmp.ne.s32.totalorder %s48, %s51
      %p57 = scmp.eq.s32.totalorder %s24, 0
      %p58 = por %p56, %p57
      %p59 = scmp.ne.s32.totalorder %s48, %s51
      %p60 = scmp.eq.s32.totalorder %s29, 1
      %p61 = por %p59, %p60
      %p62 = scmp.ne.s32.totalorder %s51, %s52
      %p63 = scmp.eq.s32.totalorder %s29, 0
      %p64 = por %p62, %p63
      %p65 = scmp.ne.s32.totalorder %s51, %s52
      %p66 = scmp.eq.s32.totalorder %s30, 1
      %p67 = por %p65, %p66
      %p69 = scmp.ne.s32.totalorder %s52, %s68
      %p70 = scmp.eq.s32.totalorder %s30, 0
      %p71 = por %p69, %p70
      %s72 = ssub.s32 %s31, %s43
      %s73 = ssub.s32 %s32, %s39
      %s74 = sor.u32 %s72, %s73
      %p75 = scmp.eq.s32.totalorder %s74, 0
      %s77 = sadd.s32 %s76, 1
      %s78 = scalar_select %p75, %s76, %s77
      %p81 = pneg %p75
      %p82 = scmp.eq.s32.totalorder %s24, 1
      %p83 = por %p81, %p82
      %p84 = scmp.ne.s32.totalorder %s76, %s79
      %p85 = scmp.eq.s32.totalorder %s24, 0
      %p86 = por %p84, %p85
      %p87 = scmp.ne.s32.totalorder %s76, %s79
      %p88 = scmp.eq.s32.totalorder %s29, 1
      %p89 = por %p87, %p88
      %p90 = scmp.ne.s32.totalorder %s79, %s80
      %p91 = scmp.eq.s32.totalorder %s29, 0
      %p92 = por %p90, %p91
      %p93 = scmp.ne.s32.totalorder %s79, %s80
      %p94 = scmp.eq.s32.totalorder %s30, 1
      %p95 = por %p93, %p94
      %p97 = scmp.ne.s32.totalorder %s80, %s96
      %p98 = scmp.eq.s32.totalorder %s30, 0
      %p99 = por %p97, %p98
      %s100 = ssub.s32 %s31, %s43
      %s101 = ssub.s32 %s32, %s39
      %s102 = sor.u32 %s100, %s101
      %p103 = scmp.eq.s32.totalorder %s102, 0
      %s105 = sadd.s32 %s104, 1
      %s106 = scalar_select %p103, %s104, %s105
      %p109 = pneg %p103
      %p110 = scmp.eq.s32.totalorder %s24, 1
      %p111 = por %p109, %p110
      %p112 = scmp.ne.s32.totalorder %s104, %s107
      %p113 = scmp.eq.s32.totalorder %s24, 0
      %p114 = por %p112, %p113
      %p115 = scmp.ne.s32.totalorder %s104, %s107
      %p116 = scmp.eq.s32.totalorder %s29, 1
      %p117 = por %p115, %p116
      %p118 = scmp.ne.s32.totalorder %s107, %s108
      %p119 = scmp.eq.s32.totalorder %s29, 0
      %p120 = por %p118, %p119
      %p121 = scmp.ne.s32.totalorder %s107, %s108
      %p122 = scmp.eq.s32.totalorder %s30, 1
      %p123 = por %p121, %p122
      %p125 = scmp.ne.s32.totalorder %s108, %s124
      %p126 = scmp.eq.s32.totalorder %s30, 0
      %p127 = por %p125, %p126
      %s129 = sadd.s32 %s128, 1
      %p132 = scmp.eq.s32.totalorder %s24, 1
      %p133 = scmp.ne.s32.totalorder %s128, %s130
      %p134 = scmp.eq.s32.totalorder %s24, 0
      %p135 = por %p133, %p134
      %p136 = scmp.ne.s32.totalorder %s128, %s130
      %p137 = scmp.eq.s32.totalorder %s29, 1
      %p138 = por %p136, %p137
      %p139 = scmp.ne.s32.totalorder %s130, %s131
      %p140 = scmp.eq.s32.totalorder %s29, 0
      %p141 = por %p139, %p140
      %p142 = scmp.ne.s32.totalorder %s130, %s131
      %p143 = scmp.eq.s32.totalorder %s30, 1
      %p144 = por %p142, %p143
      %p146 = scmp.ne.s32.totalorder %s131, %s145
      %p147 = scmp.eq.s32.totalorder %s30, 0
      %p148 = por %p146, %p147
      %s150 = sadd.s32 %s149, 1
      %p153 = scmp.eq.s32.totalorder %s24, 1
      %p154 = scmp.ne.s32.totalorder %s149, %s151
      %p155 = scmp.eq.s32.totalorder %s24, 0
      %p156 = por %p154, %p155
      %p157 = scmp.ne.s32.totalorder %s149, %s151
      %p158 = scmp.eq.s32.totalorder %s29, 1
      %p159 = por %p157, %p158
      %p160 = scmp.ne.s32.totalorder %s151, %s152
      %p161 = scmp.eq.s32.totalorder %s29, 0
      %p162 = por %p160, %p161
      %p163 = scmp.ne.s32.totalorder %s151, %s152
      %p164 = scmp.eq.s32.totalorder %s30, 1
      %p165 = por %p163, %p164
      %p167 = scmp.ne.s32.totalorder %s152, %s166
      %p168 = scmp.eq.s32.totalorder %s30, 0
      %p169 = por %p167, %p168
      %s171 = sadd.s32 %s170, 1
      %p174 = scmp.eq.s32.totalorder %s24, 1
      %p175 = scmp.ne.s32.totalorder %s170, %s172
      %p176 = scmp.eq.s32.totalorder %s24, 0
      %p177 = por %p175, %p176
      %p178 = scmp.ne.s32.totalorder %s170, %s172
      %p179 = scmp.eq.s32.totalorder %s29, 1
      %p180 = por %p178, %p179
      %p181 = scmp.ne.s32.totalorder %s172, %s173
      %p182 = scmp.eq.s32.totalorder %s29, 0
      %p183 = por %p181, %p182
      %p184 = scmp.ne.s32.totalorder %s172, %s173
      %p185 = scmp.eq.s32.totalorder %s30, 1
      %p186 = por %p184, %p185
      %p188 = scmp.ne.s32.totalorder %s173, %s187
      %p189 = scmp.eq.s32.totalorder %s30, 0
      %p190 = por %p188, %p189
      %s192 = sadd.s32 %s191, 1
      %p195 = scmp.eq.s32.totalorder %s24, 1
      %p196 = scmp.ne.s32.totalorder %s191, %s193
      %p197 = scmp.eq.s32.totalorder %s24, 0
      %p198 = por %p196, %p197
      %p199 = scmp.ne.s32.totalorder %s191, %s193
      %p200 = scmp.eq.s32.totalorder %s29, 1
      %p201 = por %p199, %p200
      %p202 = scmp.ne.s32.totalorder %s193, %s194
      %p203 = scmp.eq.s32.totalorder %s29, 0
      %p204 = por %p202, %p203
      %p205 = scmp.ne.s32.totalorder %s193, %s194
      %p206 = scmp.eq.s32.totalorder %s30, 1
      %p207 = por %p205, %p206
      %p209 = scmp.ne.s32.totalorder %s194, %s208
      %p210 = scmp.eq.s32.totalorder %s30, 0
      %p211 = por %p209, %p210
      %s212 = ssub.s32 %s31, %s43
      %s213 = ssub.s32 %s32, %s39
      %s214 = sor.u32 %s212, %s213
      %p215 = scmp.eq.s32.totalorder %s214, 0
      %s217 = sadd.s32 %s216, 1
      %s218 = scalar_select %p215, %s216, %s217
      %p221 = pneg %p215
      %p222 = scmp.eq.s32.totalorder %s24, 1
      %p223 = por %p221, %p222
      %p224 = scmp.ne.s32.totalorder %s216, %s219
      %p225 = scmp.eq.s32.totalorder %s24, 0
      %p226 = por %p224, %p225
      %p227 = scmp.ne.s32.totalorder %s216, %s219
      %p228 = scmp.eq.s32.totalorder %s29, 1
      %p229 = por %p227, %p228
      %p230 = scmp.ne.s32.totalorder %s219, %s220
      %p231 = scmp.eq.s32.totalorder %s29, 0
      %p232 = por %p230, %p231
      %p233 = scmp.ne.s32.totalorder %s219, %s220
      %p234 = scmp.eq.s32.totalorder %s30, 1
      %p235 = por %p233, %p234
      %p237 = scmp.ne.s32.totalorder %s220, %s236
      %p238 = scmp.eq.s32.totalorder %s30, 0
      %p239 = por %p237, %p238
      %s240 = ssub.s32 %s31, %s43
      %s241 = ssub.s32 %s32, %s39
      %s242 = sor.u32 %s240, %s241
      %p243 = scmp.eq.s32.totalorder %s242, 0
      %s245 = sadd.s32 %s244, 1
      %s246 = scalar_select %p243, %s244, %s245
      %p249 = pneg %p243
      %p250 = scmp.eq.s32.totalorder %s24, 1
      %p251 = por %p249, %p250
      %p252 = scmp.ne.s32.totalorder %s244, %s247
      %p253 = scmp.eq.s32.totalorder %s24, 0
      %p254 = por %p252, %p253
      %p255 = scmp.ne.s32.totalorder %s244, %s247
      %p256 = scmp.eq.s32.totalorder %s29, 1
      %p257 = por %p255, %p256
      %p258 = scmp.ne.s32.totalorder %s247, %s248
      %p259 = scmp.eq.s32.totalorder %s29, 0
      %p260 = por %p258, %p259
      %p261 = scmp.ne.s32.totalorder %s247, %s248
      %p262 = scmp.eq.s32.totalorder %s30, 1
      %p263 = por %p261, %p262
      %p265 = scmp.ne.s32.totalorder %s248, %s264
      %p266 = scmp.eq.s32.totalorder %s30, 0
      %p267 = por %p265, %p266
      %p268 = scmp.le.s32.totalorder 1, %s24
      %p269 = scmp.lt.s32.totalorder %s24, 3
      %p270 = pnand %p268, %p269
      %p271 = pneg %p270
      // Predicated region
      $region9: #{tpu_custom_call.1} parent=5 // pred_check
        _
      $region10: #{tpu_custom_call.1} parent=5 // pred_check_branch
        %273 = sbr.rel (%p270) target = $region12
      $region11: #{tpu_custom_call.1} parent=5 // pred_region
        %s274 = ssub.s32 %s24, 1
        // Predicated region
        $region13: #{tpu_custom_call.1} parent=11 // pred_check
          %p275 = pneg %p141
        $region14: #{tpu_custom_call.1} parent=11 // pred_check_branch
          %277 = sbr.rel (%p275) target = $region16
        $region15: #{tpu_custom_call.1} parent=11 // pred_region
          _
        $region16: #{tpu_custom_call.1} parent=11 // pred_fallthru
          _
        // Predicated region
        $region17: #{tpu_custom_call.1} parent=11 // pred_check
          %p278 = pneg %p162
        $region18: #{tpu_custom_call.1} parent=11 // pred_check_branch
          %280 = sbr.rel (%p278) target = $region20
        $region19: #{tpu_custom_call.1} parent=11 // pred_region
          _
        $region20: #{tpu_custom_call.1} parent=11 // pred_fallthru
          _
        // Predicated region
        $region21: #{tpu_custom_call.1} parent=11 // pred_check
          %p281 = pneg %p183
        $region22: #{tpu_custom_call.1} parent=11 // pred_check_branch
          %283 = sbr.rel (%p281) target = $region24
        $region23: #{tpu_custom_call.1} parent=11 // pred_region
          _
        $region24: #{tpu_custom_call.1} parent=11 // pred_fallthru
          _
        // Predicated region
        $region25: #{tpu_custom_call.1} parent=11 // pred_check
          %p284 = pneg %p204
        $region26: #{tpu_custom_call.1} parent=11 // pred_check_branch
          %286 = sbr.rel (%p284) target = $region28
        $region27: #{tpu_custom_call.1} parent=11 // pred_region
          _
        $region28: #{tpu_custom_call.1} parent=11 // pred_fallthru
          _
      $region12: #{tpu_custom_call.1} parent=5 // pred_fallthru
        _
      %p287 = scmp.lt.s32.totalorder %s24, 2
      // Predicated region
      $region29: #{tpu_custom_call.1} parent=5 // pred_check
        %p288 = pneg %p287
      $region30: #{tpu_custom_call.1} parent=5 // pred_check_branch
        %290 = sbr.rel (%p288) target = $region32
      $region31: #{tpu_custom_call.1} parent=5 // pred_region
        // Predicated region
        $region33: #{tpu_custom_call.1} parent=31 // pred_check
          %p291 = pneg %p58
        $region34: #{tpu_custom_call.1} parent=31 // pred_check_branch
          %293 = sbr.rel (%p291) target = $region36
        $region35: #{tpu_custom_call.1} parent=31 // pred_region
          %p294 = scmp.lt.s32.totalorder %s32, 0
          %s295 = scalar_select %p294, %s32, 0
          %p296 = scmp.lt.s32.totalorder %s31, 1
          %s297 = scalar_select %p296, %s31, 1
          %s298 = smul.addr %s295, 2
          %s299 = sadd.s32 %s297, %s298
          %s300 = smul.addr %s299, 8
          %s301 = scalar_lea.vmem %s0, %s300
        $region36: #{tpu_custom_call.1} parent=31 // pred_fallthru
          _
        // Predicated region
        $region37: #{tpu_custom_call.1} parent=31 // pred_check
          %p302 = pneg %p86
        $region38: #{tpu_custom_call.1} parent=31 // pred_check_branch
          %304 = sbr.rel (%p302) target = $region40
        $region39: #{tpu_custom_call.1} parent=31 // pred_region
          %s305 = sand.u32 %s76, 1
          %s306 = scalar_lea.sflag [#allocation3], %s305
          %s307 = sand.u32 %s76, 1
          %s308 = smul.addr %s307, 32
          %s309 = scalar_lea.vmem [#allocation2], %s308
          %s310 = smul.u32 4, %s32
          %312 = vsyncadd %s306, 0
          %s313 = smul.addr %s31, 4
          %s314 = sadd.s32 %s310, %s313
          %s315 = smul.addr %s314, 8
          %s316 = scalar_lea.hbm %s1, %s315
          %s318 = sshll.u32 %s316, 4
          %s319 = int_to_ptr.hbm [resolvable:$true] %s318
          %s320 = sshll.u32 %s309, 4
          %s321 = int_to_ptr.vmem [resolvable:$true] %s320
          %323 = dma.hbm_to_vmem [thread:$0]  %s319, 512, %s321, %s306
        $region40: #{tpu_custom_call.1} parent=31 // pred_fallthru
          _
        // Predicated region
        $region41: #{tpu_custom_call.1} parent=31 // pred_check
          %p324 = pneg %p114
        $region42: #{tpu_custom_call.1} parent=31 // pred_check_branch
          %326 = sbr.rel (%p324) target = $region44
        $region43: #{tpu_custom_call.1} parent=31 // pred_region
          %s327 = smul.u32 4, %s32
          %p328 = scmp.lt.s32.totalorder %s31, 1
          %s329 = scalar_select %p328, %s31, 1
          %p330 = scmp.lt.s32.totalorder %s327, 3
          %s331 = scalar_select %p330, %s327, 3
          %s332 = smul.addr %s329, 4
          %s333 = sadd.s32 %s331, %s332
          %s334 = smul.addr %s333, 4
          %s335 = scalar_lea.vmem %s2, %s334
          %s336 = smul.u32 4, %s32
        $region44: #{tpu_custom_call.1} parent=31 // pred_fallthru
          _
      $region32: #{tpu_custom_call.1} parent=5 // pred_fallthru
        _
      %p337 = scmp.le.s32.totalorder 1, %s24
      %p338 = scmp.lt.s32.totalorder %s24, 3
      %p339 = pnand %p337, %p338
      %p340 = pneg %p339
      // Predicated region
      $region45: #{tpu_custom_call.1} parent=5 // pred_check
        _
      $region46: #{tpu_custom_call.1} parent=5 // pred_check_branch
        %342 = sbr.rel (%p339) target = $region48
      $region47: #{tpu_custom_call.1} parent=5 // pred_region
        %s343 = ssub.s32 %s24, 1
        %s344 = sand.u32 %s79, 1
        %s345 = scalar_lea.sflag [#allocation3], %s344
        %s346 = sand.u32 %s79, 1
        %s347 = smul.addr %s346, 32
        %s348 = scalar_lea.vmem [#allocation2], %s347
        // Predicated region
        $region49: #{tpu_custom_call.1} parent=47 // pred_check
          %p349 = pneg %p92
        $region50: #{tpu_custom_call.1} parent=47 // pred_check_branch
          %351 = sbr.rel (%p349) target = $region52
        $region51: #{tpu_custom_call.1} parent=47 // pred_region
          %353 = dma.done %s345, 512
        $region52: #{tpu_custom_call.1} parent=47 // pred_fallthru
          _
        %p354 = scmp.lt.s32.totalorder %s34, 0
        %s355 = scalar_select %p354, %s34, 0
        %p356 = scmp.lt.s32.totalorder %s33, 1
        %s357 = scalar_select %p356, %s33, 1
        %s358 = smul.addr %s355, 2
        %s359 = sadd.s32 %s357, %s358
        %s360 = smul.addr %s359, 8
        %s361 = scalar_lea.vmem %s0, %s360
        %p362 = pneg %p64
        %p363 = pneg %p61
        %s364 = sand.u32 %s79, 1
        %s365 = scalar_lea.sflag [#allocation3], %s364
        %s366 = sand.u32 %s79, 1
        %s367 = smul.addr %s366, 32
        %s368 = scalar_lea.vmem [#allocation2], %s367
        %p369 = pneg %p92
        %p370 = pneg %p89
        %s371 = smul.u32 4, %s34
        %p372 = scmp.lt.s32.totalorder %s33, 1
        %s373 = scalar_select %p372, %s33, 1
        %p374 = scmp.lt.s32.totalorder %s371, 3
        %s375 = scalar_select %p374, %s371, 3
        %s376 = smul.addr %s373, 4
        %s377 = sadd.s32 %s375, %s376
        %s378 = smul.addr %s377, 4
        %s379 = scalar_lea.vmem %s2, %s378
        %p380 = pneg %p120
        %p381 = pneg %p117
        %p382 = pneg %p141
        %p383 = pneg %p138
        %p384 = pneg %p162
        %p385 = pneg %p159
        %p386 = pneg %p183
        %p387 = pneg %p180
        %p388 = pneg %p204
        %p389 = pneg %p201
        %p390 = pneg %p232
        %p391 = pneg %p229
        %s392 = sand.u32 %s219, 1
        %s393 = scalar_lea.sflag [#allocation4], %s392
        %s394 = sand.u32 %s219, 1
        %s395 = smul.addr %s394, 32
        %s396 = scalar_lea.vmem [#allocation5], %s395
        %p397 = pneg %p260
        %p398 = pneg %p257
        %s399 = sand.u32 %s247, 1
        %s400 = scalar_lea.sflag [#allocation7], %s399
        %s401 = sand.u32 %s247, 1
        %s402 = smul.addr %s401, 32
        %s403 = scalar_lea.vmem [#allocation6], %s402
        %p404 = scmp.lt.s32.totalorder %s34, 0
        %s405 = scalar_select %p404, %s34, 0
        %p406 = scmp.lt.s32.totalorder %s33, 1
        %s407 = scalar_select %p406, %s33, 1
        %s408 = smul.addr %s405, 2
        %s409 = sadd.s32 %s407, %s408
        %s410 = smul.addr %s409, 8
        %s411 = scalar_lea.vmem %s0, %s410
        %s412 = smul.u32 4, %s34
        %s413 = smul.u32 4, %s34
        %p414 = scmp.lt.s32.totalorder %s33, 1
        %s415 = scalar_select %p414, %s33, 1
        %p416 = scmp.lt.s32.totalorder %s413, 3
        %s417 = scalar_select %p416, %s413, 3
        %s418 = smul.addr %s415, 4
        %s419 = sadd.s32 %s417, %s418
        %s420 = smul.addr %s419, 4
        %s421 = scalar_lea.vmem %s2, %s420
        %s422 = smul.u32 4, %s34
        %s423 = smul.u32 4, %s34
        %s424 = smul.u32 4, %s34
        %v425 = vld [vmem:[%s348] sm:$0xff]
        %v426 = vld [vmem:[%s348 + $0x8] sm:$0xff]
        %v427 = vld [vmem:[%s348 + $0x10] sm:$0xff]
        %v428 = vld [vmem:[%s348 + $0x18] sm:$0xff]
        %v429 = vld [vmem:[%s411] sm:$0xff]
        %434 = vrot.lane.b32.xlu0 %v425, 4
        %v435 = vpop.permute.xlu0 %434
        %436 = vrot.lane.b32.xlu0 %v426, 4
        %v437 = vpop.permute.xlu0 %436
        %438 = vrot.lane.b32.xlu0 %v427, 4
        %v439 = vpop.permute.xlu0 %438
        %440 = vrot.lane.b32.xlu0 %v428, 4
        %v441 = vpop.permute.xlu0 %440
        %vm442 = vcmask 31744
        %v443 = vsel %vm442, %v435, %v437
        %v444 = vsel %vm442, %v437, %v439
        %v445 = vsel %vm442, %v439, %v441
        %v450 = vsel %vm442, %v429, %v435
        %v451 = vld [vmem:[%s421] sm:$0xff]
        %v452 = vld [vmem:[%s421 + $0x8] sm:$0xff]
        %454 = vrot.lane.b32.xlu0 %v450, 126
        %v455 = vpop.permute.xlu0 %454
        %456 = vrot.lane.b32.xlu0 %v443, 126
        %v457 = vpop.permute.xlu0 %456
        %458 = vrot.lane.b32.xlu0 %v444, 126
        %v459 = vpop.permute.xlu0 %458
        %460 = vrot.lane.b32.xlu0 %v445, 126
        %v461 = vpop.permute.xlu0 %460
        %462 = vrot.lane.b32.xlu0 %v441, 126
        %v463 = vpop.permute.xlu0 %462
        %vm464 = vcmask 1031168
        %v465 = vsel %vm464, %v455, %v457
        %v466 = vsel %vm464, %v457, %v459
        %v467 = vsel %vm464, %v459, %v461
        %v468 = vsel %vm464, %v461, %v463
        %475 = vst [vmem:[#allocation1] ss:$2 sm:$0xff] %v451
        %s476 = scalar_lea.vmem [#allocation1], 16
        %477 = vst [vmem:[%s476] ss:$2 sm:$0xff] %v452
        %v478 = vld.sshfl [vmem:[#allocation1] sm:$0xff pattern:$0x75316420]
        %v479 = vld.sshfl [vmem:[#allocation1 + $0x8] sm:$0xff pattern:$0x75316420]
        %v480 = vld.sshfl [vmem:[#allocation1 + $0x10] sm:$0xff pattern:$0x75316420]
        %v481 = vld.sshfl [vmem:[#allocation1 + $0x18] sm:$0xff pattern:$0x75316420]
        %v482 = vld [vmem:[%s3] sm:$0xff]
        %v483 = vld [vmem:[%s3 + $0x8] sm:$0xff]
        %v484 = vld [vmem:[%s4] sm:$0xff]
        %v485 = vld [vmem:[%s4 + $0x8] sm:$0xff]
        %487 = vset.pattern.permute.xlu0 0
        %488 = vperm.xlu0 %487, %v484
        %v489 = vpop.permute.xlu0 %488
        %492 = vset.pattern.permute.xlu0 0
        %493 = vperm.xlu0 %492, %v485
        %v494 = vpop.permute.xlu0 %493
        %vm496 = vcmask 228352
        %v498 = vsel %vm496, %v482, 0
        %v501 = vsel %vm496, %v483, 0
        %vm503 = vcmask 1043456
        %v504 = vsel %vm503, %v478, 0
        %v506 = vsel %vm503, %v479, 0
        %v508 = vsel %vm503, %v480, 0
        %v510 = vsel %vm503, %v481, 0
        %512 = vmatpush.msra.mxu0 0.0
        %513 = vmatpush.msra.mxu0 0.0
        %514 = vmatpush.msra.mxu0 0.0
        %515 = vmatpush.msra.mxu0 0.0
        %516 = vmatpush.msra.mxu0 0.0
        %517 = vmatpush.msra.mxu0 0.0
        %518 = vmatpush.msra.mxu0 0.0
        %519 = vmatpush.msra.mxu0 0.0
        %520 = vmatpush.msra.mxu0 0.0
        %521 = vmatpush.msra.mxu0 0.0
        %522 = vmatpush.msra.mxu0 0.0
        %523 = vmatpush.msra.mxu0 0.0
        %524 = vmatpush.msra.mxu0 %v504
        %525 = vmatpush.msra.mxu0 %v425
        %526 = vmatpush.msra.mxu0 %v465
        %527 = vmatpush.msra.mxu0 %v450
        %528 = vmatmul.f32.gmra.mxu0 %v498
        %v529 = vpop.f32.mrf.mxu0
        %v530 = vadd.f32 %v489, %v529
        %531 = vmatmul.f32.gmra.mxu0 %v501
        %v532 = vpop.f32.mrf.mxu0
        %v533 = vadd.f32 %v494, %v532
        %534 = vdwg.mxu0
        %535 = vmatpush.msra.mxu0 0.0
        %536 = vmatpush.msra.mxu0 0.0
        %537 = vmatpush.msra.mxu0 0.0
        %538 = vmatpush.msra.mxu0 0.0
        %539 = vmatpush.msra.mxu0 0.0
        %540 = vmatpush.msra.mxu0 0.0
        %541 = vmatpush.msra.mxu0 0.0
        %542 = vmatpush.msra.mxu0 0.0
        %543 = vmatpush.msra.mxu0 0.0
        %544 = vmatpush.msra.mxu0 0.0
        %545 = vmatpush.msra.mxu0 0.0
        %546 = vmatpush.msra.mxu0 0.0
        %547 = vmatpush.msra.mxu0 %v506
        %548 = vmatpush.msra.mxu0 %v426
        %549 = vmatpush.msra.mxu0 %v466
        %550 = vmatpush.msra.mxu0 %v443
        %551 = vmatmul.f32.gmra.mxu0 %v498
        %v552 = vpop.f32.mrf.mxu0
        %v553 = vadd.f32 %v489, %v552
        %554 = vmatmul.f32.gmra.mxu0 %v501
        %v555 = vpop.f32.mrf.mxu0
        %v556 = vadd.f32 %v494, %v555
        %557 = vdwg.mxu0
        %558 = vmatpush.msra.mxu0 0.0
        %559 = vmatpush.msra.mxu0 0.0
        %560 = vmatpush.msra.mxu0 0.0
        %561 = vmatpush.msra.mxu0 0.0
        %562 = vmatpush.msra.mxu0 0.0
        %563 = vmatpush.msra.mxu0 0.0
        %564 = vmatpush.msra.mxu0 0.0
        %565 = vmatpush.msra.mxu0 0.0
        %566 = vmatpush.msra.mxu0 0.0
        %567 = vmatpush.msra.mxu0 0.0
        %568 = vmatpush.msra.mxu0 0.0
        %569 = vmatpush.msra.mxu0 0.0
        %570 = vmatpush.msra.mxu0 %v508
        %571 = vmatpush.msra.mxu0 %v427
        %572 = vmatpush.msra.mxu0 %v467
        %573 = vmatpush.msra.mxu0 %v444
        %574 = vmatmul.f32.gmra.mxu0 %v498
        %v575 = vpop.f32.mrf.mxu0
        %v576 = vadd.f32 %v489, %v575
        %577 = vmatmul.f32.gmra.mxu0 %v501
        %v578 = vpop.f32.mrf.mxu0
        %v579 = vadd.f32 %v494, %v578
        %580 = vdwg.mxu0
        %581 = vmatpush.msra.mxu0 0.0
        %582 = vmatpush.msra.mxu0 0.0
        %583 = vmatpush.msra.mxu0 0.0
        %584 = vmatpush.msra.mxu0 0.0
        %585 = vmatpush.msra.mxu0 0.0
        %586 = vmatpush.msra.mxu0 0.0
        %587 = vmatpush.msra.mxu0 0.0
        %588 = vmatpush.msra.mxu0 0.0
        %589 = vmatpush.msra.mxu0 0.0
        %590 = vmatpush.msra.mxu0 0.0
        %591 = vmatpush.msra.mxu0 0.0
        %592 = vmatpush.msra.mxu0 0.0
        %593 = vmatpush.msra.mxu0 %v510
        %594 = vmatpush.msra.mxu0 %v428
        %595 = vmatpush.msra.mxu0 %v468
        %596 = vmatpush.msra.mxu0 %v445
        %597 = vmatmul.f32.gmra.mxu0 %v498
        %v598 = vpop.f32.mrf.mxu0
        %v599 = vadd.f32 %v489, %v598
        %600 = vmatmul.f32.gmra.mxu0 %v501
        %v601 = vpop.f32.mrf.mxu0
        %v602 = vadd.f32 %v494, %v601
        %603 = vdwg.mxu0
        %v604 = vtanh.pop %v530
        %v605 = vtanh.pop %v553
        %v606 = vtanh.pop %v576
        %v607 = vtanh.pop %v599
        %v608 = vxor.u32 %v533, 2147483648
        %v609 = vxor.u32 %v556, 2147483648
        %v610 = vxor.u32 %v579, 2147483648
        %v611 = vxor.u32 %v602, 2147483648
        %v612 = vmul.f32 %v608, 1.442695
        %v613 = vpow.pop %v612
        %v614 = vmul.f32 %v609, 1.442695
        %v615 = vpow.pop %v614
        %v616 = vmul.f32 %v610, 1.442695
        %v617 = vpow.pop %v616
        %v618 = vmul.f32 %v611, 1.442695
        %v619 = vpow.pop %v618
        %v620 = vadd.f32 %v613, 1.0
        %v621 = vadd.f32 %v615, 1.0
        %v622 = vadd.f32 %v617, 1.0
        %v623 = vadd.f32 %v619, 1.0
        %v624 = vrcp.pop %v620
        %v625 = vmul.f32 %v620, %v624
        %v626 = vsub.f32 1.0, %v625
        %v627 = vmul.f32 %v624, %v626
        %v628 = vadd.f32 %v624, %v627
        %vm629 = vweird.f32 %v620
        %vm630 = vweird.f32 %v624
        %vm631 = vmor %vm629, %vm630
        %v632 = vsel %vm631, %v624, %v628
        %v633 = vand.u32 2147483647, %v620
        %vm634 = vcmp.eq.f32.partialorder %v633, 8.507059e+37
        %v635 = vand.u32 %v620, 2147483648
        %v636 = vor.u32 1.1754944e-38, %v635
        %v637 = vsel %vm634, %v636, %v632
        %v638 = vmul.f32 1.0, %v637
        %v639 = vrcp.pop %v621
        %v640 = vmul.f32 %v621, %v639
        %v641 = vsub.f32 1.0, %v640
        %v642 = vmul.f32 %v639, %v641
        %v643 = vadd.f32 %v639, %v642
        %vm644 = vweird.f32 %v621
        %vm645 = vweird.f32 %v639
        %vm646 = vmor %vm644, %vm645
        %v647 = vsel %vm646, %v639, %v643
        %v648 = vand.u32 2147483647, %v621
        %vm649 = vcmp.eq.f32.partialorder %v648, 8.507059e+37
        %v650 = vand.u32 %v621, 2147483648
        %v651 = vor.u32 1.1754944e-38, %v650
        %v652 = vsel %vm649, %v651, %v647
        %v653 = vmul.f32 1.0, %v652
        %v654 = vrcp.pop %v622
        %v655 = vmul.f32 %v622, %v654
        %v656 = vsub.f32 1.0, %v655
        %v657 = vmul.f32 %v654, %v656
        %v658 = vadd.f32 %v654, %v657
        %vm659 = vweird.f32 %v622
        %vm660 = vweird.f32 %v654
        %vm661 = vmor %vm659, %vm660
        %v662 = vsel %vm661, %v654, %v658
        %v663 = vand.u32 2147483647, %v622
        %vm664 = vcmp.eq.f32.partialorder %v663, 8.507059e+37
        %v665 = vand.u32 %v622, 2147483648
        %v666 = vor.u32 1.1754944e-38, %v665
        %v667 = vsel %vm664, %v666, %v662
        %v668 = vmul.f32 1.0, %v667
        %v669 = vrcp.pop %v623
        %v670 = vmul.f32 %v623, %v669
        %v671 = vsub.f32 1.0, %v670
        %v672 = vmul.f32 %v669, %v671
        %v673 = vadd.f32 %v669, %v672
        %vm674 = vweird.f32 %v623
        %vm675 = vweird.f32 %v669
        %vm676 = vmor %vm674, %vm675
        %v677 = vsel %vm676, %v669, %v673
        %v678 = vand.u32 2147483647, %v623
        %vm679 = vcmp.eq.f32.partialorder %v678, 8.507059e+37
        %v680 = vand.u32 %v623, 2147483648
        %v681 = vor.u32 1.1754944e-38, %v680
        %v682 = vsel %vm679, %v681, %v677
        %v683 = vmul.f32 1.0, %v682
        %v684 = vmul.f32 %v604, %v638
        %v685 = vmul.f32 %v605, %v653
        %v686 = vmul.f32 %v606, %v668
        %v687 = vmul.f32 %v607, %v683
        %v688 = vld [vmem:[%s5] sm:$0xff]
        %v689 = vld [vmem:[%s5 + $0x8] sm:$0xff]
        %v690 = vld [vmem:[%s6] sm:$0xff]
        %v691 = vld [vmem:[%s6 + $0x8] sm:$0xff]
        %693 = vset.pattern.permute.xlu0 0
        %694 = vperm.xlu0 %693, %v690
        %v695 = vpop.permute.xlu0 %694
        %698 = vset.pattern.permute.xlu0 0
        %699 = vperm.xlu0 %698, %v691
        %v700 = vpop.permute.xlu0 %699
        %vm702 = vcmask 64512
        %v704 = vsel %vm702, %v688, 0
        %v707 = vsel %vm702, %v689, 0
        %709 = vmatpush.msra.mxu0 0.0
        %710 = vmatpush.msra.mxu0 0.0
        %711 = vmatpush.msra.mxu0 0.0
        %712 = vmatpush.msra.mxu0 0.0
        %713 = vmatpush.msra.mxu0 0.0
        %714 = vmatpush.msra.mxu0 0.0
        %715 = vmatpush.msra.mxu0 0.0
        %716 = vmatpush.msra.mxu0 0.0
        %717 = vmatpush.msra.mxu0 0.0
        %718 = vmatpush.msra.mxu0 0.0
        %719 = vmatpush.msra.mxu0 0.0
        %720 = vmatpush.msra.mxu0 0.0
        %721 = vmatpush.msra.mxu0 0.0
        %722 = vmatpush.msra.mxu0 0.0
        %723 = vmatpush.msra.mxu0 0.0
        %724 = vmatpush.msra.mxu0 %v684
        %725 = vmatmul.f32.gmra.mxu0 %v704
        %v726 = vpop.f32.mrf.mxu0
        %v727 = vadd.f32 %v695, %v726
        %728 = vmatmul.f32.gmra.mxu0 %v707
        %v729 = vpop.f32.mrf.mxu0
        %v730 = vadd.f32 %v700, %v729
        %731 = vdwg.mxu0
        %732 = vmatpush.msra.mxu0 0.0
        %733 = vmatpush.msra.mxu0 0.0
        %734 = vmatpush.msra.mxu0 0.0
        %735 = vmatpush.msra.mxu0 0.0
        %736 = vmatpush.msra.mxu0 0.0
        %737 = vmatpush.msra.mxu0 0.0
        %738 = vmatpush.msra.mxu0 0.0
        %739 = vmatpush.msra.mxu0 0.0
        %740 = vmatpush.msra.mxu0 0.0
        %741 = vmatpush.msra.mxu0 0.0
        %742 = vmatpush.msra.mxu0 0.0
        %743 = vmatpush.msra.mxu0 0.0
        %744 = vmatpush.msra.mxu0 0.0
        %745 = vmatpush.msra.mxu0 0.0
        %746 = vmatpush.msra.mxu0 0.0
        %747 = vmatpush.msra.mxu0 %v685
        %748 = vmatmul.f32.gmra.mxu0 %v704
        %v749 = vpop.f32.mrf.mxu0
        %v750 = vadd.f32 %v695, %v749
        %751 = vmatmul.f32.gmra.mxu0 %v707
        %v752 = vpop.f32.mrf.mxu0
        %v753 = vadd.f32 %v700, %v752
        %754 = vdwg.mxu0
        %755 = vmatpush.msra.mxu0 0.0
        %756 = vmatpush.msra.mxu0 0.0
        %757 = vmatpush.msra.mxu0 0.0
        %758 = vmatpush.msra.mxu0 0.0
        %759 = vmatpush.msra.mxu0 0.0
        %760 = vmatpush.msra.mxu0 0.0
        %761 = vmatpush.msra.mxu0 0.0
        %762 = vmatpush.msra.mxu0 0.0
        %763 = vmatpush.msra.mxu0 0.0
        %764 = vmatpush.msra.mxu0 0.0
        %765 = vmatpush.msra.mxu0 0.0
        %766 = vmatpush.msra.mxu0 0.0
        %767 = vmatpush.msra.mxu0 0.0
        %768 = vmatpush.msra.mxu0 0.0
        %769 = vmatpush.msra.mxu0 0.0
        %770 = vmatpush.msra.mxu0 %v686
        %771 = vmatmul.f32.gmra.mxu0 %v704
        %v772 = vpop.f32.mrf.mxu0
        %v773 = vadd.f32 %v695, %v772
        %774 = vmatmul.f32.gmra.mxu0 %v707
        %v775 = vpop.f32.mrf.mxu0
        %v776 = vadd.f32 %v700, %v775
        %777 = vdwg.mxu0
        %778 = vmatpush.msra.mxu0 0.0
        %779 = vmatpush.msra.mxu0 0.0
        %780 = vmatpush.msra.mxu0 0.0
        %781 = vmatpush.msra.mxu0 0.0
        %782 = vmatpush.msra.mxu0 0.0
        %783 = vmatpush.msra.mxu0 0.0
        %784 = vmatpush.msra.mxu0 0.0
        %785 = vmatpush.msra.mxu0 0.0
        %786 = vmatpush.msra.mxu0 0.0
        %787 = vmatpush.msra.mxu0 0.0
        %788 = vmatpush.msra.mxu0 0.0
        %789 = vmatpush.msra.mxu0 0.0
        %790 = vmatpush.msra.mxu0 0.0
        %791 = vmatpush.msra.mxu0 0.0
        %792 = vmatpush.msra.mxu0 0.0
        %793 = vmatpush.msra.mxu0 %v687
        %794 = vmatmul.f32.gmra.mxu0 %v704
        %v795 = vpop.f32.mrf.mxu0
        %v796 = vadd.f32 %v695, %v795
        %797 = vmatmul.f32.gmra.mxu0 %v707
        %v798 = vpop.f32.mrf.mxu0
        %v799 = vadd.f32 %v700, %v798
        %800 = vdwg.mxu0
        %v801 = vadd.f32 %v727, %v425
        %v802 = vadd.f32 %v750, %v426
        %v803 = vadd.f32 %v773, %v427
        %v804 = vadd.f32 %v796, %v428
        %805 = vst [vmem:[%s396] sm:$0xff] %v801
        %806 = vst [vmem:[%s396 + $0x8] sm:$0xff] %v802
        %807 = vst [vmem:[%s396 + $0x10] sm:$0xff] %v803
        %808 = vst [vmem:[%s396 + $0x18] sm:$0xff] %v804
        %809 = vst [vmem:[%s403] sm:$0xff] %v730
        %810 = vst [vmem:[%s403 + $0x8] sm:$0xff] %v753
        %811 = vst [vmem:[%s403 + $0x10] sm:$0xff] %v776
        %812 = vst [vmem:[%s403 + $0x18] sm:$0xff] %v799
        %s813 = sand.u32 %s219, 1
        %s814 = scalar_lea.sflag [#allocation4], %s813
        %s815 = sand.u32 %s219, 1
        %s816 = smul.addr %s815, 32
        %s817 = scalar_lea.vmem [#allocation5], %s816
        %s818 = sand.u32 %s247, 1
        %s819 = scalar_lea.sflag [#allocation7], %s818
        %s820 = sand.u32 %s247, 1
        %s821 = smul.addr %s820, 32
        %s822 = scalar_lea.vmem [#allocation6], %s821
        // Predicated region
        $region53: #{tpu_custom_call.1} parent=47 // pred_check
          %p823 = pneg %p229
        $region54: #{tpu_custom_call.1} parent=47 // pred_check_branch
          %825 = sbr.rel (%p823) target = $region56
        $region55: #{tpu_custom_call.1} parent=47 // pred_region
          %s826 = smul.u32 4, %s34
          %828 = vsyncadd %s814, 0
          %s829 = smul.addr %s33, 4
          %s830 = sadd.s32 %s826, %s829
          %s831 = smul.addr %s830, 8
          %s832 = scalar_lea.hbm %s7, %s831
          %s834 = sshll.u32 %s817, 4
          %s835 = int_to_ptr.vmem [resolvable:$true] %s834
          %s836 = sshll.u32 %s832, 4
          %s837 = int_to_ptr.hbm [resolvable:$true] %s836
          %839 = dma.vmem_to_hbm [thread:$0]  %s835, 512, %s837, %s814
        $region56: #{tpu_custom_call.1} parent=47 // pred_fallthru
          _
        // Predicated region
        $region57: #{tpu_custom_call.1} parent=47 // pred_check
          %p840 = pneg %p257
        $region58: #{tpu_custom_call.1} parent=47 // pred_check_branch
          %842 = sbr.rel (%p840) target = $region60
        $region59: #{tpu_custom_call.1} parent=47 // pred_region
          %s843 = smul.u32 4, %s34
          %845 = vsyncadd %s819, 0
          %s846 = smul.addr %s33, 4
          %s847 = sadd.s32 %s843, %s846
          %s848 = smul.addr %s847, 8
          %s849 = scalar_lea.hbm %s8, %s848
          %s851 = sshll.u32 %s822, 4
          %s852 = int_to_ptr.vmem [resolvable:$true] %s851
          %s853 = sshll.u32 %s849, 4
          %s854 = int_to_ptr.hbm [resolvable:$true] %s853
          %856 = dma.vmem_to_hbm [thread:$0]  %s852, 512, %s854, %s819
        $region60: #{tpu_custom_call.1} parent=47 // pred_fallthru
          _
      $region48: #{tpu_custom_call.1} parent=5 // pred_fallthru
        _
      %p857 = scmp.le.s32.totalorder 2, %s24
      // Predicated region
      $region61: #{tpu_custom_call.1} parent=5 // pred_check
        %p858 = pneg %p857
      $region62: #{tpu_custom_call.1} parent=5 // pred_check_branch
        %860 = sbr.rel (%p858) target = $region64
      $region63: #{tpu_custom_call.1} parent=5 // pred_region
        %s861 = ssub.s32 %s24, 2
        // Predicated region
        $region65: #{tpu_custom_call.1} parent=63 // pred_check
          %p862 = pneg %p235
        $region66: #{tpu_custom_call.1} parent=63 // pred_check_branch
          %864 = sbr.rel (%p862) target = $region68
        $region67: #{tpu_custom_call.1} parent=63 // pred_region
          %s865 = sand.u32 %s220, 1
          %s866 = scalar_lea.sflag [#allocation4], %s865
          %s867 = sand.u32 %s220, 1
          %s868 = smul.addr %s867, 32
          %s869 = scalar_lea.vmem [#allocation5], %s868
          %871 = dma.done %s866, 512
        $region68: #{tpu_custom_call.1} parent=63 // pred_fallthru
          _
        // Predicated region
        $region69: #{tpu_custom_call.1} parent=63 // pred_check
          %p872 = pneg %p263
        $region70: #{tpu_custom_call.1} parent=63 // pred_check_branch
          %874 = sbr.rel (%p872) target = $region72
        $region71: #{tpu_custom_call.1} parent=63 // pred_region
          %s875 = sand.u32 %s248, 1
          %s876 = scalar_lea.sflag [#allocation7], %s875
          %s877 = sand.u32 %s248, 1
          %s878 = smul.addr %s877, 32
          %s879 = scalar_lea.vmem [#allocation6], %s878
          %881 = dma.done %s876, 512
        $region72: #{tpu_custom_call.1} parent=63 // pred_fallthru
          _
      $region64: #{tpu_custom_call.1} parent=5 // pred_fallthru
        _
    $region6: #{tpu_custom_call.1} parent=1 // loop_footer
      %s28 = sadd.s32 1, %s24
    $region7: #{tpu_custom_call.1} parent=1 // loop_footer_branch
      %23 = sbr.rel target = $region3
    $region8: #{tpu_custom_call.1} parent=1 // loop_exit
      _
    %882 = vsyncpa [#allocation3], 1
    %s883 = scalar_lea.sflag [#allocation3], 1
    %884 = vsyncpa %s883, 1
    %885 = vsyncpa [#allocation4], 1
    %s886 = scalar_lea.sflag [#allocation4], 1
    %887 = vsyncpa %s886, 1
    %888 = vsyncpa [#allocation7], 1
    %s889 = scalar_lea.sflag [#allocation7], 1
    %890 = vsyncpa %s889, 1

</llo_original>
